<compile_context>
chip_gen: v7x
topology: tpu7x:2x2x1
jax: 0.10.0
libtpu: 0.0.40
codegen_flags: <defaults>
</compile_context>

<pallas_src>
import functools

import jax
import jax.numpy as jnp
from jax.experimental import pallas as pl
from jax.experimental.pallas import tpu as pltpu


def _agg_kernel(idxp_ref, yd_ref, o_ref, *, scale, k, fs, n, q):
    """Fused one-hot MXU gather with the output permute baked into the store.

    idxp_ref: (1, k*q) int32.  Column j*q + s*m + i holds s*n + idx[i, j].
    yd_ref:   (fs, scale*n) f32.  Column s*n + r holds yd[r, c1*scale + s].
    o_ref:    (k*fs, q) output, already in the final (k*(F//scale), m*scale)
              layout (q = m*scale, lane-dense).
    """
    sn = scale * n
    kq = k * q

    # Exact 3-way bf16 split of the f32 feature table: x == hi + mid + lo
    # bit-exactly, and the one-hot RHS is exactly representable in bf16, so
    # three DEFAULT bf16 MXU passes reproduce the f32 gather exactly.
    x = yd_ref[...]                                       # (fs, scale*n) f32
    hi = x.astype(jnp.bfloat16)
    r1 = x - hi.astype(jnp.float32)
    mid = r1.astype(jnp.bfloat16)
    lo = (r1 - mid.astype(jnp.float32)).astype(jnp.bfloat16)

    # Single one-hot RHS covering every (j, s, i) selection.
    sel = idxp_ref[...]                                   # (1, k*q) int32
    r_iota = jax.lax.broadcasted_iota(jnp.int32, (sn, kq), 0)
    onehot = (r_iota == sel).astype(jnp.bfloat16)         # (scale*n, k*q)

    res = (jnp.dot(hi, onehot, preferred_element_type=jnp.float32)
           + jnp.dot(mid, onehot, preferred_element_type=jnp.float32)
           + jnp.dot(lo, onehot, preferred_element_type=jnp.float32))
    # res: (fs, k*q) f32; columns j*q..(j+1)*q are 128-lane aligned slices.

    for j in range(k):                                    # k small & static
        o_ref[pl.ds(j * fs, fs), :] = res[:, j * q:(j + 1) * q].astype(o_ref.dtype)


def graph_aggregation_spatial_gai1(y_patch, yd_patch, idx_k, *, scale, k):
    """Forward pass matching the PyTorch module."""
    m = y_patch.shape[0]
    yd = jnp.reshape(yd_patch, (m, -1))                   # (n, F), n == m
    n, f = yd.shape
    assert f % scale == 0
    fs = f // scale
    q = m * scale                                         # output lane width
    # NOTE: q == 128 at this size -> fully dense vst stores; other sizes stay
    # correct (full-array block dims) but degrade to masked stores.

    # Tiny pre-shuffles (KB-sized glue, done once in XLA):
    # yd_fused[c1, s*n + r] = yd[r, c1*scale + s]
    yd_fused = jnp.transpose(yd.reshape(n, fs, scale), (1, 2, 0)).reshape(fs, scale * n)
    # idxp[0, j*q + s*m + i] = s*n + idx_k[0, i, j]   (scale fused into contraction)
    idx_t = idx_k[0].astype(jnp.int32)                    # (m, k)
    offs = jnp.arange(scale, dtype=jnp.int32)[None, :, None] * jnp.int32(n)
    idxp = (idx_t.T[:, None, :] + offs).reshape(1, k * q)  # (k, scale, m) -> (1, k*q)

    kernel = functools.partial(_agg_kernel, scale=scale, k=k, fs=fs, n=n, q=q)
    out2d = pl.pallas_call(
        kernel,
        grid=(1,),                                        # single invocation
        in_specs=[
            pl.BlockSpec((1, k * q), lambda i: (0, 0)),
            pl.BlockSpec((fs, scale * n), lambda i: (0, 0)),
        ],
        out_specs=pl.BlockSpec((k * fs, q), lambda i: (0, 0)),
        out_shape=jax.ShapeDtypeStruct((k * fs, q), yd.dtype),
        compiler_params=pltpu.CompilerParams(
            dimension_semantics=("arbitrary",)),
    )(idxp, yd_fused)

    return out2d[None]                                    # (1, k*(F//scale), m*scale)


def _reference_forward(y_patch, yd_patch, idx_k, *, scale, k):
    """Pure-JAX transcription of the PyTorch forward (no Pallas)."""
    m = y_patch.shape[0]
    yd = jnp.reshape(yd_patch, (m, -1))
    f = yd.shape[1]
    z = jnp.take(yd, idx_k[0], axis=0)                    # (m, k, F)
    z_patch = jnp.transpose(z, (1, 2, 0))                 # (k, F, m)
    return z_patch.reshape(1, k * (f // scale), m * scale)


if __name__ == "__main__":
    scale = 2
    k = 5
    m = 64          # number of query patches  -> m * scale = 128 output lanes
    f = 32          # feature dim of yd_patch (divisible by scale)
    fy = 8          # feature dim of y_patch (only its row count m is used)

    key = jax.random.PRNGKey(0)
    k1, k2, k3 = jax.random.split(key, 3)
    y_patch = jax.random.normal(k1, (m, fy), dtype=jnp.float32)
    yd_patch = jax.random.normal(k2, (m, f), dtype=jnp.float32)
    idx_k = jax.random.randint(k3, (1, m, k), 0, m, dtype=jnp.int32)

    out = graph_aggregation_spatial_gai1(y_patch, yd_patch, idx_k,
                                         scale=scale, k=k)
    out = jax.block_until_ready(out)

    assert out.shape == (1, k * (f // scale), m * scale), out.shape

    ref = _reference_forward(y_patch, yd_patch, idx_k, scale=scale, k=k)
    # The bf16 hi/mid/lo split keeps the gather bit-exact: require equality.
    if not bool(jnp.array_equal(out, ref)):
        raise RuntimeError("Pallas kernel output does not match reference")

    print("KERNEL_OK")
</pallas_src>

<mosaic_0001>
module attributes {stable_mosaic.version = 11 : i64} {
  func.func @_agg_kernel(%arg0: i32, %arg1: memref<1x640xi32, #tpu.memory_space<vmem>>, %arg2: memref<16x128xf32, #tpu.memory_space<vmem>>, %arg3: memref<80x128xf32, #tpu.memory_space<vmem>>) attributes {dimension_semantics = [#tpu.dimension_semantics<arbitrary>], iteration_bounds = array<i64: 1>, scalar_prefetch = 0 : i64, scratch_operands = 0 : i64, tpu.core_type = #tpu.core_type<tc>, window_params = [{pipeline_mode = #tpu.pipeline_mode<synchronous>, transform_indices = @transform_0, window_bounds = array<i64: 1, 640>}, {pipeline_mode = #tpu.pipeline_mode<synchronous>, transform_indices = @transform_1, window_bounds = array<i64: 16, 128>}, {pipeline_mode = #tpu.pipeline_mode<synchronous>, transform_indices = @transform_2, window_bounds = array<i64: 80, 128>}]} {
    %c0 = arith.constant 0 : index
    %c0_0 = arith.constant 0 : index
    %0 = vector.load %arg2[%c0, %c0_0] : memref<16x128xf32, #tpu.memory_space<vmem>>, vector<16x128xf32>
    %1 = arith.truncf %0 : vector<16x128xf32> to vector<16x128xbf16>
    %2 = arith.extf %1 : vector<16x128xbf16> to vector<16x128xf32>
    %3 = arith.subf %0, %2 : vector<16x128xf32>
    %4 = arith.truncf %3 : vector<16x128xf32> to vector<16x128xbf16>
    %5 = arith.extf %4 : vector<16x128xbf16> to vector<16x128xf32>
    %6 = arith.subf %3, %5 : vector<16x128xf32>
    %7 = arith.truncf %6 : vector<16x128xf32> to vector<16x128xbf16>
    %c0_1 = arith.constant 0 : index
    %c0_2 = arith.constant 0 : index
    %8 = vector.load %arg1[%c0_1, %c0_2] : memref<1x640xi32, #tpu.memory_space<vmem>>, vector<1x640xi32>
    %9 = tpu.iota {dimensions = array<i32: 0>} : vector<128x640xi32>
    %10 = vector.broadcast %8 : vector<1x640xi32> to vector<128x640xi32>
    %11 = arith.cmpi eq, %9, %10 : vector<128x640xi32>
    %12 = arith.extui %11 : vector<128x640xi1> to vector<128x640xi32>
    %13 = arith.sitofp %12 : vector<128x640xi32> to vector<128x640xf32>
    %14 = arith.truncf %13 : vector<128x640xf32> to vector<128x640xbf16>
    %cst = arith.constant dense<0.000000e+00> : vector<16x640xf32>
    %15 = tpu.matmul %1, %14, %cst {dimension_numbers = #tpu.dot_dimension_numbers<[1], [0], [0], [1], [0, 0, 1, 1], [], []>} : vector<16x128xbf16>, vector<128x640xbf16>, vector<16x640xf32> -> vector<16x640xf32>
    %cst_3 = arith.constant dense<0.000000e+00> : vector<16x640xf32>
    %16 = tpu.matmul %4, %14, %cst_3 {dimension_numbers = #tpu.dot_dimension_numbers<[1], [0], [0], [1], [0, 0, 1, 1], [], []>} : vector<16x128xbf16>, vector<128x640xbf16>, vector<16x640xf32> -> vector<16x640xf32>
    %17 = arith.addf %15, %16 : vector<16x640xf32>
    %cst_4 = arith.constant dense<0.000000e+00> : vector<16x640xf32>
    %18 = tpu.matmul %7, %14, %cst_4 {dimension_numbers = #tpu.dot_dimension_numbers<[1], [0], [0], [1], [0, 0, 1, 1], [], []>} : vector<16x128xbf16>, vector<128x640xbf16>, vector<16x640xf32> -> vector<16x640xf32>
    %19 = arith.addf %17, %18 : vector<16x640xf32>
    %20 = vector.extract_strided_slice %19 {offsets = [0, 0], sizes = [16, 128], strides = [1, 1]} : vector<16x640xf32> to vector<16x128xf32>
    %c0_5 = arith.constant 0 : index
    %c0_6 = arith.constant 0 : index
    %21 = vector.load %arg3[%c0_5, %c0_6] : memref<80x128xf32, #tpu.memory_space<vmem>>, vector<16x128xf32>
    tpu.vector_store %arg3[%c0_5, %c0_6], %20 {strides = array<i32>} : memref<80x128xf32, #tpu.memory_space<vmem>>, vector<16x128xf32>,
    %22 = vector.extract_strided_slice %19 {offsets = [0, 128], sizes = [16, 128], strides = [1, 1]} : vector<16x640xf32> to vector<16x128xf32>
    %c16 = arith.constant 16 : index
    %c0_7 = arith.constant 0 : index
    %23 = vector.load %arg3[%c16, %c0_7] : memref<80x128xf32, #tpu.memory_space<vmem>>, vector<16x128xf32>
    tpu.vector_store %arg3[%c16, %c0_7], %22 {strides = array<i32>} : memref<80x128xf32, #tpu.memory_space<vmem>>, vector<16x128xf32>,
    %24 = vector.extract_strided_slice %19 {offsets = [0, 256], sizes = [16, 128], strides = [1, 1]} : vector<16x640xf32> to vector<16x128xf32>
    %c32 = arith.constant 32 : index
    %c0_8 = arith.constant 0 : index
    %25 = vector.load %arg3[%c32, %c0_8] : memref<80x128xf32, #tpu.memory_space<vmem>>, vector<16x128xf32>
    tpu.vector_store %arg3[%c32, %c0_8], %24 {strides = array<i32>} : memref<80x128xf32, #tpu.memory_space<vmem>>, vector<16x128xf32>,
    %26 = vector.extract_strided_slice %19 {offsets = [0, 384], sizes = [16, 128], strides = [1, 1]} : vector<16x640xf32> to vector<16x128xf32>
    %c48 = arith.constant 48 : index
    %c0_9 = arith.constant 0 : index
    %27 = vector.load %arg3[%c48, %c0_9] : memref<80x128xf32, #tpu.memory_space<vmem>>, vector<16x128xf32>
    tpu.vector_store %arg3[%c48, %c0_9], %26 {strides = array<i32>} : memref<80x128xf32, #tpu.memory_space<vmem>>, vector<16x128xf32>,
    %28 = vector.extract_strided_slice %19 {offsets = [0, 512], sizes = [16, 128], strides = [1, 1]} : vector<16x640xf32> to vector<16x128xf32>
    %c64 = arith.constant 64 : index
    %c0_10 = arith.constant 0 : index
    %29 = vector.load %arg3[%c64, %c0_10] : memref<80x128xf32, #tpu.memory_space<vmem>>, vector<16x128xf32>
    tpu.vector_store %arg3[%c64, %c0_10], %28 {strides = array<i32>} : memref<80x128xf32, #tpu.memory_space<vmem>>, vector<16x128xf32>,
    return
  }
  func.func @transform_0(%arg0: i32) -> (i32, i32) {
    %c0_i32 = arith.constant 0 : i32
    %c0_i32_0 = arith.constant 0 : i32
    %c0_i32_1 = arith.constant 0 : i32
    return %c0_i32, %c0_i32_0 : i32, i32
  }
  func.func @transform_1(%arg0: i32) -> (i32, i32) {
    %c0_i32 = arith.constant 0 : i32
    %c0_i32_0 = arith.constant 0 : i32
    %c0_i32_1 = arith.constant 0 : i32
    return %c0_i32, %c0_i32_0 : i32, i32
  }
  func.func @transform_2(%arg0: i32) -> (i32, i32) {
    %c0_i32 = arith.constant 0 : i32
    %c0_i32_0 = arith.constant 0 : i32
    %c0_i32_1 = arith.constant 0 : i32
    return %c0_i32, %c0_i32_0 : i32, i32
  }
}

</mosaic_0001>

<llo_original>
// kernel: tpu_custom_call.1
$region0: #{tpu_custom_call.1}
  #allocation0 [shape = 'u32[]', space=smem, size = 0x4, offset = 0x4, fixed_abs, tag = 'smem constant byte address 0x4 - core index']
  #allocation1 [shape = 'u32[144,128]{1,0:T(1,128)}', space=vmem, size = 0x12000, scoped, tag = 'internal scratch']
  %s0 = inlined_call_operand.hbm [shape: s32[1,640], index: 0, kind: input, shape index: {}]
  %s1 = inlined_call_operand.hbm [shape: f32[16,128], index: 1, kind: input, shape index: {}]
  %s2 = inlined_call_operand.hbm [shape: f32[80,128], index: 2, kind: output, shape index: {}]
  %s3 = sld [smem:[#allocation0]]
  $region26: #{tpu_custom_call.1} parent=0
    _
  %s5 = ssub.s32 1, %s3
  %s6 = scalar_select 0, %s5, %s3
  $region1: #{tpu_custom_call.1} parent=0
    #allocation2 [shape = 'u8[2560]{0}', space=vmem, size = 0xc00, scoped, tag = 'input window, operand 0, single buffered']
    #allocation3 [shape = 's32[1]{0}', space=sflag, size = 0x4, scoped, tag = 'scoped memory for tpu_custom_call.1']
    #allocation4 [shape = 's32[1]{0}', space=sflag, size = 0x4, scoped, tag = 'scoped memory for tpu_custom_call.1']
    #allocation5 [shape = 'u8[8192]{0}', space=vmem, size = 0x2000, scoped, tag = 'input window, operand 1, single buffered']
    #allocation6 [shape = 's32[1]{0}', space=sflag, size = 0x4, scoped, tag = 'scoped memory for tpu_custom_call.1']
    #allocation7 [shape = 'u8[40960]{0}', space=vmem, size = 0xa000, scoped, tag = 'output window, operand 0, single buffered']
    %7 = vsyncpa [#allocation3], 0
    %8 = vsyncpa [#allocation6], 0
    %9 = vsyncpa [#allocation4], 0
    // Predicated region
    $region2: #{tpu_custom_call.1} parent=1 // pred_check
      _
    $region3: #{tpu_custom_call.1} parent=1 // pred_check_branch
      %11 = sbr.rel (0) target = $region5
    $region4: #{tpu_custom_call.1} parent=1 // pred_region
      %s13 = ssub.s32 80, 80
      %14 = vsyncadd [#allocation3], %s13
      %s16 = sshll.u32 [#allocation2], 4
      %s17 = int_to_ptr.vmem [resolvable:$true] %s16
      %19 = dma.hbm_to_vmem [thread:$0]  %s0, 80, %s17, [#allocation3]
    $region5: #{tpu_custom_call.1} parent=1 // pred_fallthru
      _
    // Predicated region
    $region6: #{tpu_custom_call.1} parent=1 // pred_check
      _
    $region7: #{tpu_custom_call.1} parent=1 // pred_check_branch
      %21 = sbr.rel (0) target = $region9
    $region8: #{tpu_custom_call.1} parent=1 // pred_region
      %s23 = ssub.s32 256, 256
      %24 = vsyncadd [#allocation6], %s23
      %s25 = sshll.u32 [#allocation5], 4
      %s26 = int_to_ptr.vmem [resolvable:$true] %s25
      %31 = dma.hbm_to_vmem [thread:$0]  %s1, 256, %s26, [#allocation6], 128, 128, 8
    $region9: #{tpu_custom_call.1} parent=1 // pred_fallthru
      _
    // Predicated region
    $region10: #{tpu_custom_call.1} parent=1 // pred_check
      _
    $region11: #{tpu_custom_call.1} parent=1 // pred_check_branch
      %33 = sbr.rel (0) target = $region13
    $region12: #{tpu_custom_call.1} parent=1 // pred_region
      %34 = dma.done [#allocation3], 80
    $region13: #{tpu_custom_call.1} parent=1 // pred_fallthru
      _
    // Predicated region
    $region14: #{tpu_custom_call.1} parent=1 // pred_check
      _
    $region15: #{tpu_custom_call.1} parent=1 // pred_check_branch
      %36 = sbr.rel (0) target = $region17
    $region16: #{tpu_custom_call.1} parent=1 // pred_region
      %37 = dma.done [#allocation6], 256
    $region17: #{tpu_custom_call.1} parent=1 // pred_fallthru
      _
    %v39 = vld [vmem:[#allocation5] sm:$0xff]
    %v40 = vld [vmem:[#allocation5 + $0x8] sm:$0xff]
    %v41 = vpack.c.bf16 %v40, %v39
    %v42 = vunpack.c.l.bf16 %v41
    %v43 = vunpack.c.h.bf16 %v41
    %v44 = vsub.f32 %v39, %v42
    %v45 = vsub.f32 %v40, %v43
    %v46 = vpack.c.bf16 %v45, %v44
    %v47 = vunpack.c.l.bf16 %v46
    %v48 = vunpack.c.h.bf16 %v46
    %v49 = vsub.f32 %v44, %v47
    %v50 = vsub.f32 %v45, %v48
    %v51 = vpack.c.bf16 %v50, %v49
    %v52 = vld [vmem:[#allocation2] sm:$0x1f]
    %v53 = vlaneseq
    %v54 = vshrl.u32 %v53, 7
    %v55 = vadd.s32 %v54, 8
    %v56 = vadd.s32 %v54, 16
    %v57 = vadd.s32 %v54, 24
    %v58 = vadd.s32 %v54, 32
    %v59 = vadd.s32 %v54, 40
    %v60 = vadd.s32 %v54, 48
    %v61 = vadd.s32 %v54, 56
    %v62 = vadd.s32 %v54, 64
    %v63 = vadd.s32 %v54, 72
    %v64 = vadd.s32 %v54, 80
    %v65 = vadd.s32 %v54, 88
    %v66 = vadd.s32 %v54, 96
    %v67 = vadd.s32 %v54, 104
    %v68 = vadd.s32 %v54, 112
    %v69 = vadd.s32 %v54, 120
    %v70 = vlaneseq
    %v71 = vshrl.u32 %v70, 7
    %v72 = vsub.s32 0, %v71
    %v73 = vrot.slane %v52, %v72
    %v74 = vlaneseq
    %v75 = vshrl.u32 %v74, 7
    %v76 = vsub.s32 1, %v75
    %v77 = vrot.slane %v52, %v76
    %v78 = vlaneseq
    %v79 = vshrl.u32 %v78, 7
    %v80 = vsub.s32 2, %v79
    %v81 = vrot.slane %v52, %v80
    %v82 = vlaneseq
    %v83 = vshrl.u32 %v82, 7
    %v84 = vsub.s32 3, %v83
    %v85 = vrot.slane %v52, %v84
    %v86 = vlaneseq
    %v87 = vshrl.u32 %v86, 7
    %v88 = vsub.s32 4, %v87
    %v89 = vrot.slane %v52, %v88
    %vm90 = vcmp.eq.s32.totalorder %v54, %v73
    %vm91 = vcmp.eq.s32.totalorder %v54, %v77
    %vm92 = vcmp.eq.s32.totalorder %v54, %v81
    %vm93 = vcmp.eq.s32.totalorder %v54, %v85
    %vm94 = vcmp.eq.s32.totalorder %v54, %v89
    %vm95 = vcmp.eq.s32.totalorder %v55, %v73
    %vm96 = vcmp.eq.s32.totalorder %v55, %v77
    %vm97 = vcmp.eq.s32.totalorder %v55, %v81
    %vm98 = vcmp.eq.s32.totalorder %v55, %v85
    %vm99 = vcmp.eq.s32.totalorder %v55, %v89
    %vm100 = vcmp.eq.s32.totalorder %v56, %v73
    %vm101 = vcmp.eq.s32.totalorder %v56, %v77
    %vm102 = vcmp.eq.s32.totalorder %v56, %v81
    %vm103 = vcmp.eq.s32.totalorder %v56, %v85
    %vm104 = vcmp.eq.s32.totalorder %v56, %v89
    %vm105 = vcmp.eq.s32.totalorder %v57, %v73
    %vm106 = vcmp.eq.s32.totalorder %v57, %v77
    %vm107 = vcmp.eq.s32.totalorder %v57, %v81
    %vm108 = vcmp.eq.s32.totalorder %v57, %v85
    %vm109 = vcmp.eq.s32.totalorder %v57, %v89
    %vm110 = vcmp.eq.s32.totalorder %v58, %v73
    %vm111 = vcmp.eq.s32.totalorder %v58, %v77
    %vm112 = vcmp.eq.s32.totalorder %v58, %v81
    %vm113 = vcmp.eq.s32.totalorder %v58, %v85
    %vm114 = vcmp.eq.s32.totalorder %v58, %v89
    %vm115 = vcmp.eq.s32.totalorder %v59, %v73
    %vm116 = vcmp.eq.s32.totalorder %v59, %v77
    %vm117 = vcmp.eq.s32.totalorder %v59, %v81
    %vm118 = vcmp.eq.s32.totalorder %v59, %v85
    %vm119 = vcmp.eq.s32.totalorder %v59, %v89
    %vm120 = vcmp.eq.s32.totalorder %v60, %v73
    %vm121 = vcmp.eq.s32.totalorder %v60, %v77
    %vm122 = vcmp.eq.s32.totalorder %v60, %v81
    %vm123 = vcmp.eq.s32.totalorder %v60, %v85
    %vm124 = vcmp.eq.s32.totalorder %v60, %v89
    %vm125 = vcmp.eq.s32.totalorder %v61, %v73
    %vm126 = vcmp.eq.s32.totalorder %v61, %v77
    %vm127 = vcmp.eq.s32.totalorder %v61, %v81
    %vm128 = vcmp.eq.s32.totalorder %v61, %v85
    %vm129 = vcmp.eq.s32.totalorder %v61, %v89
    %vm130 = vcmp.eq.s32.totalorder %v62, %v73
    %vm131 = vcmp.eq.s32.totalorder %v62, %v77
    %vm132 = vcmp.eq.s32.totalorder %v62, %v81
    %vm133 = vcmp.eq.s32.totalorder %v62, %v85
    %vm134 = vcmp.eq.s32.totalorder %v62, %v89
    %vm135 = vcmp.eq.s32.totalorder %v63, %v73
    %vm136 = vcmp.eq.s32.totalorder %v63, %v77
    %vm137 = vcmp.eq.s32.totalorder %v63, %v81
    %vm138 = vcmp.eq.s32.totalorder %v63, %v85
    %vm139 = vcmp.eq.s32.totalorder %v63, %v89
    %vm140 = vcmp.eq.s32.totalorder %v64, %v73
    %vm141 = vcmp.eq.s32.totalorder %v64, %v77
    %vm142 = vcmp.eq.s32.totalorder %v64, %v81
    %vm143 = vcmp.eq.s32.totalorder %v64, %v85
    %vm144 = vcmp.eq.s32.totalorder %v64, %v89
    %vm145 = vcmp.eq.s32.totalorder %v65, %v73
    %vm146 = vcmp.eq.s32.totalorder %v65, %v77
    %vm147 = vcmp.eq.s32.totalorder %v65, %v81
    %vm148 = vcmp.eq.s32.totalorder %v65, %v85
    %vm149 = vcmp.eq.s32.totalorder %v65, %v89
    %vm150 = vcmp.eq.s32.totalorder %v66, %v73
    %vm151 = vcmp.eq.s32.totalorder %v66, %v77
    %vm152 = vcmp.eq.s32.totalorder %v66, %v81
    %vm153 = vcmp.eq.s32.totalorder %v66, %v85
    %vm154 = vcmp.eq.s32.totalorder %v66, %v89
    %vm155 = vcmp.eq.s32.totalorder %v67, %v73
    %vm156 = vcmp.eq.s32.totalorder %v67, %v77
    %vm157 = vcmp.eq.s32.totalorder %v67, %v81
    %vm158 = vcmp.eq.s32.totalorder %v67, %v85
    %vm159 = vcmp.eq.s32.totalorder %v67, %v89
    %vm160 = vcmp.eq.s32.totalorder %v68, %v73
    %vm161 = vcmp.eq.s32.totalorder %v68, %v77
    %vm162 = vcmp.eq.s32.totalorder %v68, %v81
    %vm163 = vcmp.eq.s32.totalorder %v68, %v85
    %vm164 = vcmp.eq.s32.totalorder %v68, %v89
    %vm165 = vcmp.eq.s32.totalorder %v69, %v73
    %vm166 = vcmp.eq.s32.totalorder %v69, %v77
    %vm167 = vcmp.eq.s32.totalorder %v69, %v81
    %vm168 = vcmp.eq.s32.totalorder %v69, %v85
    %vm169 = vcmp.eq.s32.totalorder %v69, %v89
    %v170 = vsel %vm90, 1, 0
    %v171 = vsel %vm91, 1, 0
    %v172 = vsel %vm92, 1, 0
    %v173 = vsel %vm93, 1, 0
    %v174 = vsel %vm94, 1, 0
    %v175 = vsel %vm95, 1, 0
    %v176 = vsel %vm96, 1, 0
    %v177 = vsel %vm97, 1, 0
    %v178 = vsel %vm98, 1, 0
    %v179 = vsel %vm99, 1, 0
    %v180 = vsel %vm100, 1, 0
    %v181 = vsel %vm101, 1, 0
    %v182 = vsel %vm102, 1, 0
    %v183 = vsel %vm103, 1, 0
    %v184 = vsel %vm104, 1, 0
    %v185 = vsel %vm105, 1, 0
    %v186 = vsel %vm106, 1, 0
    %v187 = vsel %vm107, 1, 0
    %v188 = vsel %vm108, 1, 0
    %v189 = vsel %vm109, 1, 0
    %v190 = vsel %vm110, 1, 0
    %v191 = vsel %vm111, 1, 0
    %v192 = vsel %vm112, 1, 0
    %v193 = vsel %vm113, 1, 0
    %v194 = vsel %vm114, 1, 0
    %v195 = vsel %vm115, 1, 0
    %v196 = vsel %vm116, 1, 0
    %v197 = vsel %vm117, 1, 0
    %v198 = vsel %vm118, 1, 0
    %v199 = vsel %vm119, 1, 0
    %v200 = vsel %vm120, 1, 0
    %v201 = vsel %vm121, 1, 0
    %v202 = vsel %vm122, 1, 0
    %v203 = vsel %vm123, 1, 0
    %v204 = vsel %vm124, 1, 0
    %v205 = vsel %vm125, 1, 0
    %v206 = vsel %vm126, 1, 0
    %v207 = vsel %vm127, 1, 0
    %v208 = vsel %vm128, 1, 0
    %v209 = vsel %vm129, 1, 0
    %v210 = vsel %vm130, 1, 0
    %v211 = vsel %vm131, 1, 0
    %v212 = vsel %vm132, 1, 0
    %v213 = vsel %vm133, 1, 0
    %v214 = vsel %vm134, 1, 0
    %v215 = vsel %vm135, 1, 0
    %v216 = vsel %vm136, 1, 0
    %v217 = vsel %vm137, 1, 0
    %v218 = vsel %vm138, 1, 0
    %v219 = vsel %vm139, 1, 0
    %v220 = vsel %vm140, 1, 0
    %v221 = vsel %vm141, 1, 0
    %v222 = vsel %vm142, 1, 0
    %v223 = vsel %vm143, 1, 0
    %v224 = vsel %vm144, 1, 0
    %v225 = vsel %vm145, 1, 0
    %v226 = vsel %vm146, 1, 0
    %v227 = vsel %vm147, 1, 0
    %v228 = vsel %vm148, 1, 0
    %v229 = vsel %vm149, 1, 0
    %v230 = vsel %vm150, 1, 0
    %v231 = vsel %vm151, 1, 0
    %v232 = vsel %vm152, 1, 0
    %v233 = vsel %vm153, 1, 0
    %v234 = vsel %vm154, 1, 0
    %v235 = vsel %vm155, 1, 0
    %v236 = vsel %vm156, 1, 0
    %v237 = vsel %vm157, 1, 0
    %v238 = vsel %vm158, 1, 0
    %v239 = vsel %vm159, 1, 0
    %v240 = vsel %vm160, 1, 0
    %v241 = vsel %vm161, 1, 0
    %v242 = vsel %vm162, 1, 0
    %v243 = vsel %vm163, 1, 0
    %v244 = vsel %vm164, 1, 0
    %v245 = vsel %vm165, 1, 0
    %v246 = vsel %vm166, 1, 0
    %v247 = vsel %vm167, 1, 0
    %v248 = vsel %vm168, 1, 0
    %v249 = vsel %vm169, 1, 0
    %v250 = vcvt.s32.f32 %v170
    %v251 = vcvt.s32.f32 %v171
    %v252 = vcvt.s32.f32 %v172
    %v253 = vcvt.s32.f32 %v173
    %v254 = vcvt.s32.f32 %v174
    %v255 = vcvt.s32.f32 %v175
    %v256 = vcvt.s32.f32 %v176
    %v257 = vcvt.s32.f32 %v177
    %v258 = vcvt.s32.f32 %v178
    %v259 = vcvt.s32.f32 %v179
    %v260 = vcvt.s32.f32 %v180
    %v261 = vcvt.s32.f32 %v181
    %v262 = vcvt.s32.f32 %v182
    %v263 = vcvt.s32.f32 %v183
    %v264 = vcvt.s32.f32 %v184
    %v265 = vcvt.s32.f32 %v185
    %v266 = vcvt.s32.f32 %v186
    %v267 = vcvt.s32.f32 %v187
    %v268 = vcvt.s32.f32 %v188
    %v269 = vcvt.s32.f32 %v189
    %v270 = vcvt.s32.f32 %v190
    %v271 = vcvt.s32.f32 %v191
    %v272 = vcvt.s32.f32 %v192
    %v273 = vcvt.s32.f32 %v193
    %v274 = vcvt.s32.f32 %v194
    %v275 = vcvt.s32.f32 %v195
    %v276 = vcvt.s32.f32 %v196
    %v277 = vcvt.s32.f32 %v197
    %v278 = vcvt.s32.f32 %v198
    %v279 = vcvt.s32.f32 %v199
    %v280 = vcvt.s32.f32 %v200
    %v281 = vcvt.s32.f32 %v201
    %v282 = vcvt.s32.f32 %v202
    %v283 = vcvt.s32.f32 %v203
    %v284 = vcvt.s32.f32 %v204
    %v285 = vcvt.s32.f32 %v205
    %v286 = vcvt.s32.f32 %v206
    %v287 = vcvt.s32.f32 %v207
    %v288 = vcvt.s32.f32 %v208
    %v289 = vcvt.s32.f32 %v209
    %v290 = vcvt.s32.f32 %v210
    %v291 = vcvt.s32.f32 %v211
    %v292 = vcvt.s32.f32 %v212
    %v293 = vcvt.s32.f32 %v213
    %v294 = vcvt.s32.f32 %v214
    %v295 = vcvt.s32.f32 %v215
    %v296 = vcvt.s32.f32 %v216
    %v297 = vcvt.s32.f32 %v217
    %v298 = vcvt.s32.f32 %v218
    %v299 = vcvt.s32.f32 %v219
    %v300 = vcvt.s32.f32 %v220
    %v301 = vcvt.s32.f32 %v221
    %v302 = vcvt.s32.f32 %v222
    %v303 = vcvt.s32.f32 %v223
    %v304 = vcvt.s32.f32 %v224
    %v305 = vcvt.s32.f32 %v225
    %v306 = vcvt.s32.f32 %v226
    %v307 = vcvt.s32.f32 %v227
    %v308 = vcvt.s32.f32 %v228
    %v309 = vcvt.s32.f32 %v229
    %v310 = vcvt.s32.f32 %v230
    %v311 = vcvt.s32.f32 %v231
    %v312 = vcvt.s32.f32 %v232
    %v313 = vcvt.s32.f32 %v233
    %v314 = vcvt.s32.f32 %v234
    %v315 = vcvt.s32.f32 %v235
    %v316 = vcvt.s32.f32 %v236
    %v317 = vcvt.s32.f32 %v237
    %v318 = vcvt.s32.f32 %v238
    %v319 = vcvt.s32.f32 %v239
    %v320 = vcvt.s32.f32 %v240
    %v321 = vcvt.s32.f32 %v241
    %v322 = vcvt.s32.f32 %v242
    %v323 = vcvt.s32.f32 %v243
    %v324 = vcvt.s32.f32 %v244
    %v325 = vcvt.s32.f32 %v245
    %v326 = vcvt.s32.f32 %v246
    %v327 = vcvt.s32.f32 %v247
    %v328 = vcvt.s32.f32 %v248
    %v329 = vcvt.s32.f32 %v249
    %v330 = vpack.c.bf16 %v255, %v250
    %v331 = vpack.c.bf16 %v256, %v251
    %v332 = vpack.c.bf16 %v257, %v252
    %v333 = vpack.c.bf16 %v258, %v253
    %v334 = vpack.c.bf16 %v259, %v254
    %v335 = vpack.c.bf16 %v265, %v260
    %v336 = vpack.c.bf16 %v266, %v261
    %v337 = vpack.c.bf16 %v267, %v262
    %v338 = vpack.c.bf16 %v268, %v263
    %v339 = vpack.c.bf16 %v269, %v264
    %v340 = vpack.c.bf16 %v275, %v270
    %v341 = vpack.c.bf16 %v276, %v271
    %v342 = vpack.c.bf16 %v277, %v272
    %v343 = vpack.c.bf16 %v278, %v273
    %v344 = vpack.c.bf16 %v279, %v274
    %v345 = vpack.c.bf16 %v285, %v280
    %v346 = vpack.c.bf16 %v286, %v281
    %v347 = vpack.c.bf16 %v287, %v282
    %v348 = vpack.c.bf16 %v288, %v283
    %v349 = vpack.c.bf16 %v289, %v284
    %v350 = vpack.c.bf16 %v295, %v290
    %v351 = vpack.c.bf16 %v296, %v291
    %v352 = vpack.c.bf16 %v297, %v292
    %v353 = vpack.c.bf16 %v298, %v293
    %v354 = vpack.c.bf16 %v299, %v294
    %v355 = vpack.c.bf16 %v305, %v300
    %v356 = vpack.c.bf16 %v306, %v301
    %v357 = vpack.c.bf16 %v307, %v302
    %v358 = vpack.c.bf16 %v308, %v303
    %v359 = vpack.c.bf16 %v309, %v304
    %v360 = vpack.c.bf16 %v315, %v310
    %v361 = vpack.c.bf16 %v316, %v311
    %v362 = vpack.c.bf16 %v317, %v312
    %v363 = vpack.c.bf16 %v318, %v313
    %v364 = vpack.c.bf16 %v319, %v314
    %v365 = vpack.c.bf16 %v325, %v320
    %v366 = vpack.c.bf16 %v326, %v321
    %v367 = vpack.c.bf16 %v327, %v322
    %v368 = vpack.c.bf16 %v328, %v323
    %v369 = vpack.c.bf16 %v329, %v324
    %370 = vmatprep.subr.bf16.mxu0 %v331
    %371 = vmatpush1.bf16.msra.mxu0 %v330
    %372 = vmatprep.subr.bf16.mxu0 %v336
    %373 = vmatpush1.bf16.msra.mxu0 %v335
    %374 = vmatprep.subr.bf16.mxu0 %v341
    %375 = vmatpush1.bf16.msra.mxu0 %v340
    %376 = vmatprep.subr.bf16.mxu0 %v346
    %377 = vmatpush1.bf16.msra.mxu0 %v345
    %378 = vmatprep.subr.bf16.mxu0 %v351
    %379 = vmatpush1.bf16.msra.mxu0 %v350
    %380 = vmatprep.subr.bf16.mxu0 %v356
    %381 = vmatpush1.bf16.msra.mxu0 %v355
    %382 = vmatprep.subr.bf16.mxu0 %v361
    %383 = vmatpush1.bf16.msra.mxu0 %v360
    %384 = vmatprep.subr.bf16.mxu0 %v366
    %385 = vmatpush1.bf16.msra.mxu0 %v365
    %386 = vmatprep.subr.bf16.mxu0 0
    %387 = vmatpush1.bf16.msra.mxu0 0
    %388 = vmatprep.subr.bf16.mxu0 0
    %389 = vmatpush1.bf16.msra.mxu0 0
    %390 = vmatprep.subr.bf16.mxu0 0
    %391 = vmatpush1.bf16.msra.mxu0 0
    %392 = vmatprep.subr.bf16.mxu0 0
    %393 = vmatpush1.bf16.msra.mxu0 0
    %394 = vmatprep.subr.bf16.mxu0 0
    %395 = vmatpush1.bf16.msra.mxu0 0
    %396 = vmatprep.subr.bf16.mxu0 0
    %397 = vmatpush1.bf16.msra.mxu0 0
    %398 = vmatprep.subr.bf16.mxu0 0
    %399 = vmatpush1.bf16.msra.mxu0 0
    %400 = vmatprep.subr.bf16.mxu0 0
    %401 = vmatpush1.bf16.msra.mxu0 0
    %402 = vmatprep.mubr.bf16.mxu0 0
    %403 = vmatmul.mubr.bf16.gmra.mrb[0].mxu0 %v46
    %v404 = vpop.f32.mrb[0].mxu0
    %v405 = vadd.f32 0.0, %v404
    %v406 = vpop.f32.mrb[0].mxu0
    %v407 = vadd.f32 0.0, %v406
    %v408 = vpop.f32.mrb[0].mxu0
    %v409 = vadd.f32 0.0, %v408
    %v410 = vpop.f32.mrb[0].mxu0
    %v411 = vadd.f32 0.0, %v410
    %412 = vdwg.mxu0
    %413 = vmatprep.subr.bf16.mxu0 %v333
    %414 = vmatpush1.bf16.msra.mxu0 %v332
    %415 = vmatprep.subr.bf16.mxu0 %v338
    %416 = vmatpush1.bf16.msra.mxu0 %v337
    %417 = vmatprep.subr.bf16.mxu0 %v343
    %418 = vmatpush1.bf16.msra.mxu0 %v342
    %419 = vmatprep.subr.bf16.mxu0 %v348
    %420 = vmatpush1.bf16.msra.mxu0 %v347
    %421 = vmatprep.subr.bf16.mxu0 %v353
    %422 = vmatpush1.bf16.msra.mxu0 %v352
    %423 = vmatprep.subr.bf16.mxu0 %v358
    %424 = vmatpush1.bf16.msra.mxu0 %v357
    %425 = vmatprep.subr.bf16.mxu0 %v363
    %426 = vmatpush1.bf16.msra.mxu0 %v362
    %427 = vmatprep.subr.bf16.mxu0 %v368
    %428 = vmatpush1.bf16.msra.mxu0 %v367
    %429 = vmatprep.subr.bf16.mxu0 0
    %430 = vmatpush1.bf16.msra.mxu0 0
    %431 = vmatprep.subr.bf16.mxu0 0
    %432 = vmatpush1.bf16.msra.mxu0 0
    %433 = vmatprep.subr.bf16.mxu0 0
    %434 = vmatpush1.bf16.msra.mxu0 0
    %435 = vmatprep.subr.bf16.mxu0 0
    %436 = vmatpush1.bf16.msra.mxu0 0
    %437 = vmatprep.subr.bf16.mxu0 0
    %438 = vmatpush1.bf16.msra.mxu0 0
    %439 = vmatprep.subr.bf16.mxu0 0
    %440 = vmatpush1.bf16.msra.mxu0 0
    %441 = vmatprep.subr.bf16.mxu0 0
    %442 = vmatpush1.bf16.msra.mxu0 0
    %443 = vmatprep.subr.bf16.mxu0 0
    %444 = vmatpush1.bf16.msra.mxu0 0
    %445 = vmatprep.mubr.bf16.mxu0 0
    %446 = vmatmul.mubr.bf16.gmra.mrb[0].mxu0 %v46
    %v447 = vpop.f32.mrb[0].mxu0
    %v448 = vadd.f32 0.0, %v447
    %v449 = vpop.f32.mrb[0].mxu0
    %v450 = vadd.f32 0.0, %v449
    %v451 = vpop.f32.mrb[0].mxu0
    %v452 = vadd.f32 0.0, %v451
    %v453 = vpop.f32.mrb[0].mxu0
    %v454 = vadd.f32 0.0, %v453
    %455 = vdwg.mxu0
    %456 = vmatprep.subr.bf16.mxu0 0
    %457 = vmatpush1.bf16.msra.mxu0 %v334
    %458 = vmatprep.subr.bf16.mxu0 0
    %459 = vmatpush1.bf16.msra.mxu0 %v339
    %460 = vmatprep.subr.bf16.mxu0 0
    %461 = vmatpush1.bf16.msra.mxu0 %v344
    %462 = vmatprep.subr.bf16.mxu0 0
    %463 = vmatpush1.bf16.msra.mxu0 %v349
    %464 = vmatprep.subr.bf16.mxu0 0
    %465 = vmatpush1.bf16.msra.mxu0 %v354
    %466 = vmatprep.subr.bf16.mxu0 0
    %467 = vmatpush1.bf16.msra.mxu0 %v359
    %468 = vmatprep.subr.bf16.mxu0 0
    %469 = vmatpush1.bf16.msra.mxu0 %v364
    %470 = vmatprep.subr.bf16.mxu0 0
    %471 = vmatpush1.bf16.msra.mxu0 %v369
    %472 = vmatprep.subr.bf16.mxu0 0
    %473 = vmatpush1.bf16.msra.mxu0 0
    %474 = vmatprep.subr.bf16.mxu0 0
    %475 = vmatpush1.bf16.msra.mxu0 0
    %476 = vmatprep.subr.bf16.mxu0 0
    %477 = vmatpush1.bf16.msra.mxu0 0
    %478 = vmatprep.subr.bf16.mxu0 0
    %479 = vmatpush1.bf16.msra.mxu0 0
    %480 = vmatprep.subr.bf16.mxu0 0
    %481 = vmatpush1.bf16.msra.mxu0 0
    %482 = vmatprep.subr.bf16.mxu0 0
    %483 = vmatpush1.bf16.msra.mxu0 0
    %484 = vmatprep.subr.bf16.mxu0 0
    %485 = vmatpush1.bf16.msra.mxu0 0
    %486 = vmatprep.subr.bf16.mxu0 0
    %487 = vmatpush1.bf16.msra.mxu0 0
    %488 = vmatprep.mubr.bf16.mxu0 0
    %489 = vmatmul.mubr.bf16.gmra.mrb[0].mxu0 %v46
    %v490 = vpop.f32.mrb[0].mxu0
    %v491 = vadd.f32 0.0, %v490
    %v492 = vpop.f32.mrb[0].mxu0
    %v493 = vpop.f32.mrb[0].mxu0
    %v494 = vadd.f32 0.0, %v493
    %v495 = vpop.f32.mrb[0].mxu0
    %496 = vdwg.mxu0
    %497 = vmatprep.subr.bf16.mxu0 %v331
    %498 = vmatpush1.bf16.msra.mxu0 %v330
    %499 = vmatprep.subr.bf16.mxu0 %v336
    %500 = vmatpush1.bf16.msra.mxu0 %v335
    %501 = vmatprep.subr.bf16.mxu0 %v341
    %502 = vmatpush1.bf16.msra.mxu0 %v340
    %503 = vmatprep.subr.bf16.mxu0 %v346
    %504 = vmatpush1.bf16.msra.mxu0 %v345
    %505 = vmatprep.subr.bf16.mxu0 %v351
    %506 = vmatpush1.bf16.msra.mxu0 %v350
    %507 = vmatprep.subr.bf16.mxu0 %v356
    %508 = vmatpush1.bf16.msra.mxu0 %v355
    %509 = vmatprep.subr.bf16.mxu0 %v361
    %510 = vmatpush1.bf16.msra.mxu0 %v360
    %511 = vmatprep.subr.bf16.mxu0 %v366
    %512 = vmatpush1.bf16.msra.mxu0 %v365
    %513 = vmatprep.subr.bf16.mxu0 0
    %514 = vmatpush1.bf16.msra.mxu0 0
    %515 = vmatprep.subr.bf16.mxu0 0
    %516 = vmatpush1.bf16.msra.mxu0 0
    %517 = vmatprep.subr.bf16.mxu0 0
    %518 = vmatpush1.bf16.msra.mxu0 0
    %519 = vmatprep.subr.bf16.mxu0 0
    %520 = vmatpush1.bf16.msra.mxu0 0
    %521 = vmatprep.subr.bf16.mxu0 0
    %522 = vmatpush1.bf16.msra.mxu0 0
    %523 = vmatprep.subr.bf16.mxu0 0
    %524 = vmatpush1.bf16.msra.mxu0 0
    %525 = vmatprep.subr.bf16.mxu0 0
    %526 = vmatpush1.bf16.msra.mxu0 0
    %527 = vmatprep.subr.bf16.mxu0 0
    %528 = vmatpush1.bf16.msra.mxu0 0
    %529 = vmatprep.mubr.bf16.mxu0 0
    %530 = vmatmul.mubr.bf16.gmra.mrb[0].mxu0 %v41
    %v531 = vpop.f32.mrb[0].mxu0
    %v532 = vadd.f32 %v405, %v531
    %v533 = vpop.f32.mrb[0].mxu0
    %v534 = vadd.f32 %v407, %v533
    %v535 = vpop.f32.mrb[0].mxu0
    %v536 = vadd.f32 %v409, %v535
    %v537 = vpop.f32.mrb[0].mxu0
    %v538 = vadd.f32 %v411, %v537
    %539 = vdwg.mxu0
    %540 = vmatprep.subr.bf16.mxu0 %v333
    %541 = vmatpush1.bf16.msra.mxu0 %v332
    %542 = vmatprep.subr.bf16.mxu0 %v338
    %543 = vmatpush1.bf16.msra.mxu0 %v337
    %544 = vmatprep.subr.bf16.mxu0 %v343
    %545 = vmatpush1.bf16.msra.mxu0 %v342
    %546 = vmatprep.subr.bf16.mxu0 %v348
    %547 = vmatpush1.bf16.msra.mxu0 %v347
    %548 = vmatprep.subr.bf16.mxu0 %v353
    %549 = vmatpush1.bf16.msra.mxu0 %v352
    %550 = vmatprep.subr.bf16.mxu0 %v358
    %551 = vmatpush1.bf16.msra.mxu0 %v357
    %552 = vmatprep.subr.bf16.mxu0 %v363
    %553 = vmatpush1.bf16.msra.mxu0 %v362
    %554 = vmatprep.subr.bf16.mxu0 %v368
    %555 = vmatpush1.bf16.msra.mxu0 %v367
    %556 = vmatprep.subr.bf16.mxu0 0
    %557 = vmatpush1.bf16.msra.mxu0 0
    %558 = vmatprep.subr.bf16.mxu0 0
    %559 = vmatpush1.bf16.msra.mxu0 0
    %560 = vmatprep.subr.bf16.mxu0 0
    %561 = vmatpush1.bf16.msra.mxu0 0
    %562 = vmatprep.subr.bf16.mxu0 0
    %563 = vmatpush1.bf16.msra.mxu0 0
    %564 = vmatprep.subr.bf16.mxu0 0
    %565 = vmatpush1.bf16.msra.mxu0 0
    %566 = vmatprep.subr.bf16.mxu0 0
    %567 = vmatpush1.bf16.msra.mxu0 0
    %568 = vmatprep.subr.bf16.mxu0 0
    %569 = vmatpush1.bf16.msra.mxu0 0
    %570 = vmatprep.subr.bf16.mxu0 0
    %571 = vmatpush1.bf16.msra.mxu0 0
    %572 = vmatprep.mubr.bf16.mxu0 0
    %573 = vmatmul.mubr.bf16.gmra.mrb[0].mxu0 %v41
    %v574 = vpop.f32.mrb[0].mxu0
    %v575 = vadd.f32 %v448, %v574
    %v576 = vpop.f32.mrb[0].mxu0
    %v577 = vadd.f32 %v450, %v576
    %v578 = vpop.f32.mrb[0].mxu0
    %v579 = vadd.f32 %v452, %v578
    %v580 = vpop.f32.mrb[0].mxu0
    %v581 = vadd.f32 %v454, %v580
    %582 = vdwg.mxu0
    %583 = vmatprep.subr.bf16.mxu0 0
    %584 = vmatpush1.bf16.msra.mxu0 %v334
    %585 = vmatprep.subr.bf16.mxu0 0
    %586 = vmatpush1.bf16.msra.mxu0 %v339
    %587 = vmatprep.subr.bf16.mxu0 0
    %588 = vmatpush1.bf16.msra.mxu0 %v344
    %589 = vmatprep.subr.bf16.mxu0 0
    %590 = vmatpush1.bf16.msra.mxu0 %v349
    %591 = vmatprep.subr.bf16.mxu0 0
    %592 = vmatpush1.bf16.msra.mxu0 %v354
    %593 = vmatprep.subr.bf16.mxu0 0
    %594 = vmatpush1.bf16.msra.mxu0 %v359
    %595 = vmatprep.subr.bf16.mxu0 0
    %596 = vmatpush1.bf16.msra.mxu0 %v364
    %597 = vmatprep.subr.bf16.mxu0 0
    %598 = vmatpush1.bf16.msra.mxu0 %v369
    %599 = vmatprep.subr.bf16.mxu0 0
    %600 = vmatpush1.bf16.msra.mxu0 0
    %601 = vmatprep.subr.bf16.mxu0 0
    %602 = vmatpush1.bf16.msra.mxu0 0
    %603 = vmatprep.subr.bf16.mxu0 0
    %604 = vmatpush1.bf16.msra.mxu0 0
    %605 = vmatprep.subr.bf16.mxu0 0
    %606 = vmatpush1.bf16.msra.mxu0 0
    %607 = vmatprep.subr.bf16.mxu0 0
    %608 = vmatpush1.bf16.msra.mxu0 0
    %609 = vmatprep.subr.bf16.mxu0 0
    %610 = vmatpush1.bf16.msra.mxu0 0
    %611 = vmatprep.subr.bf16.mxu0 0
    %612 = vmatpush1.bf16.msra.mxu0 0
    %613 = vmatprep.subr.bf16.mxu0 0
    %614 = vmatpush1.bf16.msra.mxu0 0
    %615 = vmatprep.mubr.bf16.mxu0 0
    %616 = vmatmul.mubr.bf16.gmra.mrb[0].mxu0 %v41
    %v617 = vpop.f32.mrb[0].mxu0
    %v618 = vadd.f32 %v491, %v617
    %v619 = vpop.f32.mrb[0].mxu0
    %v620 = vpop.f32.mrb[0].mxu0
    %v621 = vadd.f32 %v494, %v620
    %v622 = vpop.f32.mrb[0].mxu0
    %623 = vdwg.mxu0
    %624 = vmatprep.subr.bf16.mxu0 %v331
    %625 = vmatpush1.bf16.msra.mxu0 %v330
    %626 = vmatprep.subr.bf16.mxu0 %v336
    %627 = vmatpush1.bf16.msra.mxu0 %v335
    %628 = vmatprep.subr.bf16.mxu0 %v341
    %629 = vmatpush1.bf16.msra.mxu0 %v340
    %630 = vmatprep.subr.bf16.mxu0 %v346
    %631 = vmatpush1.bf16.msra.mxu0 %v345
    %632 = vmatprep.subr.bf16.mxu0 %v351
    %633 = vmatpush1.bf16.msra.mxu0 %v350
    %634 = vmatprep.subr.bf16.mxu0 %v356
    %635 = vmatpush1.bf16.msra.mxu0 %v355
    %636 = vmatprep.subr.bf16.mxu0 %v361
    %637 = vmatpush1.bf16.msra.mxu0 %v360
    %638 = vmatprep.subr.bf16.mxu0 %v366
    %639 = vmatpush1.bf16.msra.mxu0 %v365
    %640 = vmatprep.subr.bf16.mxu0 0
    %641 = vmatpush1.bf16.msra.mxu0 0
    %642 = vmatprep.subr.bf16.mxu0 0
    %643 = vmatpush1.bf16.msra.mxu0 0
    %644 = vmatprep.subr.bf16.mxu0 0
    %645 = vmatpush1.bf16.msra.mxu0 0
    %646 = vmatprep.subr.bf16.mxu0 0
    %647 = vmatpush1.bf16.msra.mxu0 0
    %648 = vmatprep.subr.bf16.mxu0 0
    %649 = vmatpush1.bf16.msra.mxu0 0
    %650 = vmatprep.subr.bf16.mxu0 0
    %651 = vmatpush1.bf16.msra.mxu0 0
    %652 = vmatprep.subr.bf16.mxu0 0
    %653 = vmatpush1.bf16.msra.mxu0 0
    %654 = vmatprep.subr.bf16.mxu0 0
    %655 = vmatpush1.bf16.msra.mxu0 0
    %656 = vmatprep.mubr.bf16.mxu0 0
    %657 = vmatmul.mubr.bf16.gmra.mrb[0].mxu0 %v51
    %v658 = vpop.f32.mrb[0].mxu0
    %v659 = vadd.f32 0.0, %v658
    %v660 = vpop.f32.mrb[0].mxu0
    %v661 = vadd.f32 0.0, %v660
    %v662 = vpop.f32.mrb[0].mxu0
    %v663 = vadd.f32 0.0, %v662
    %v664 = vpop.f32.mrb[0].mxu0
    %v665 = vadd.f32 0.0, %v664
    %666 = vdwg.mxu0
    %667 = vmatprep.subr.bf16.mxu0 %v333
    %668 = vmatpush1.bf16.msra.mxu0 %v332
    %669 = vmatprep.subr.bf16.mxu0 %v338
    %670 = vmatpush1.bf16.msra.mxu0 %v337
    %671 = vmatprep.subr.bf16.mxu0 %v343
    %672 = vmatpush1.bf16.msra.mxu0 %v342
    %673 = vmatprep.subr.bf16.mxu0 %v348
    %674 = vmatpush1.bf16.msra.mxu0 %v347
    %675 = vmatprep.subr.bf16.mxu0 %v353
    %676 = vmatpush1.bf16.msra.mxu0 %v352
    %677 = vmatprep.subr.bf16.mxu0 %v358
    %678 = vmatpush1.bf16.msra.mxu0 %v357
    %679 = vmatprep.subr.bf16.mxu0 %v363
    %680 = vmatpush1.bf16.msra.mxu0 %v362
    %681 = vmatprep.subr.bf16.mxu0 %v368
    %682 = vmatpush1.bf16.msra.mxu0 %v367
    %683 = vmatprep.subr.bf16.mxu0 0
    %684 = vmatpush1.bf16.msra.mxu0 0
    %685 = vmatprep.subr.bf16.mxu0 0
    %686 = vmatpush1.bf16.msra.mxu0 0
    %687 = vmatprep.subr.bf16.mxu0 0
    %688 = vmatpush1.bf16.msra.mxu0 0
    %689 = vmatprep.subr.bf16.mxu0 0
    %690 = vmatpush1.bf16.msra.mxu0 0
    %691 = vmatprep.subr.bf16.mxu0 0
    %692 = vmatpush1.bf16.msra.mxu0 0
    %693 = vmatprep.subr.bf16.mxu0 0
    %694 = vmatpush1.bf16.msra.mxu0 0
    %695 = vmatprep.subr.bf16.mxu0 0
    %696 = vmatpush1.bf16.msra.mxu0 0
    %697 = vmatprep.subr.bf16.mxu0 0
    %698 = vmatpush1.bf16.msra.mxu0 0
    %699 = vmatprep.mubr.bf16.mxu0 0
    %700 = vmatmul.mubr.bf16.gmra.mrb[0].mxu0 %v51
    %v701 = vpop.f32.mrb[0].mxu0
    %v702 = vadd.f32 0.0, %v701
    %v703 = vpop.f32.mrb[0].mxu0
    %v704 = vadd.f32 0.0, %v703
    %v705 = vpop.f32.mrb[0].mxu0
    %v706 = vadd.f32 0.0, %v705
    %v707 = vpop.f32.mrb[0].mxu0
    %v708 = vadd.f32 0.0, %v707
    %709 = vdwg.mxu0
    %710 = vmatprep.subr.bf16.mxu0 0
    %711 = vmatpush1.bf16.msra.mxu0 %v334
    %712 = vmatprep.subr.bf16.mxu0 0
    %713 = vmatpush1.bf16.msra.mxu0 %v339
    %714 = vmatprep.subr.bf16.mxu0 0
    %715 = vmatpush1.bf16.msra.mxu0 %v344
    %716 = vmatprep.subr.bf16.mxu0 0
    %717 = vmatpush1.bf16.msra.mxu0 %v349
    %718 = vmatprep.subr.bf16.mxu0 0
    %719 = vmatpush1.bf16.msra.mxu0 %v354
    %720 = vmatprep.subr.bf16.mxu0 0
    %721 = vmatpush1.bf16.msra.mxu0 %v359
    %722 = vmatprep.subr.bf16.mxu0 0
    %723 = vmatpush1.bf16.msra.mxu0 %v364
    %724 = vmatprep.subr.bf16.mxu0 0
    %725 = vmatpush1.bf16.msra.mxu0 %v369
    %726 = vmatprep.subr.bf16.mxu0 0
    %727 = vmatpush1.bf16.msra.mxu0 0
    %728 = vmatprep.subr.bf16.mxu0 0
    %729 = vmatpush1.bf16.msra.mxu0 0
    %730 = vmatprep.subr.bf16.mxu0 0
    %731 = vmatpush1.bf16.msra.mxu0 0
    %732 = vmatprep.subr.bf16.mxu0 0
    %733 = vmatpush1.bf16.msra.mxu0 0
    %734 = vmatprep.subr.bf16.mxu0 0
    %735 = vmatpush1.bf16.msra.mxu0 0
    %736 = vmatprep.subr.bf16.mxu0 0
    %737 = vmatpush1.bf16.msra.mxu0 0
    %738 = vmatprep.subr.bf16.mxu0 0
    %739 = vmatpush1.bf16.msra.mxu0 0
    %740 = vmatprep.subr.bf16.mxu0 0
    %741 = vmatpush1.bf16.msra.mxu0 0
    %742 = vmatprep.mubr.bf16.mxu0 0
    %743 = vmatmul.mubr.bf16.gmra.mrb[0].mxu0 %v51
    %v744 = vpop.f32.mrb[0].mxu0
    %v745 = vadd.f32 0.0, %v744
    %v746 = vpop.f32.mrb[0].mxu0
    %v747 = vpop.f32.mrb[0].mxu0
    %v748 = vadd.f32 0.0, %v747
    %v749 = vpop.f32.mrb[0].mxu0
    %750 = vdwg.mxu0
    %v751 = vadd.f32 %v532, %v659
    %v752 = vadd.f32 %v534, %v661
    %v753 = vadd.f32 %v575, %v702
    %v754 = vadd.f32 %v577, %v704
    %v755 = vadd.f32 %v618, %v745
    %v756 = vadd.f32 %v536, %v663
    %v757 = vadd.f32 %v538, %v665
    %v758 = vadd.f32 %v579, %v706
    %v759 = vadd.f32 %v581, %v708
    %v760 = vadd.f32 %v621, %v748
    %761 = vst [vmem:[#allocation7] sm:$0xff] %v751
    %762 = vst [vmem:[#allocation7 + $0x8] sm:$0xff] %v756
    %763 = vst [vmem:[#allocation7 + $0x10] sm:$0xff] %v752
    %764 = vst [vmem:[#allocation7 + $0x18] sm:$0xff] %v757
    %765 = vst [vmem:[#allocation7 + $0x20] sm:$0xff] %v753
    %766 = vst [vmem:[#allocation7 + $0x28] sm:$0xff] %v758
    %767 = vst [vmem:[#allocation7 + $0x30] sm:$0xff] %v754
    %768 = vst [vmem:[#allocation7 + $0x38] sm:$0xff] %v759
    %769 = vst [vmem:[#allocation7 + $0x40] sm:$0xff] %v755
    %770 = vst [vmem:[#allocation7 + $0x48] sm:$0xff] %v760
    // Predicated region
    $region18: #{tpu_custom_call.1} parent=1 // pred_check
      _
    $region19: #{tpu_custom_call.1} parent=1 // pred_check_branch
      %772 = sbr.rel (0) target = $region21
    $region20: #{tpu_custom_call.1} parent=1 // pred_region
      %s774 = ssub.s32 1280, 1280
      %775 = vsyncadd [#allocation4], %s774
      %s776 = sshll.u32 [#allocation7], 4
      %s777 = int_to_ptr.vmem [resolvable:$true] %s776
      %782 = dma.vmem_to_hbm [thread:$0]  %s777, 1280, %s2, [#allocation4], 128, 128, 8
    $region21: #{tpu_custom_call.1} parent=1 // pred_fallthru
      _
    // Predicated region
    $region22: #{tpu_custom_call.1} parent=1 // pred_check
      _
    $region23: #{tpu_custom_call.1} parent=1 // pred_check_branch
      %784 = sbr.rel (0) target = $region25
    $region24: #{tpu_custom_call.1} parent=1 // pred_region
      %785 = dma.done [#allocation4], 1280
    $region25: #{tpu_custom_call.1} parent=1 // pred_fallthru
      _
    %786 = vsyncpa [#allocation3], 1
    %787 = vsyncpa [#allocation6], 1
    %788 = vsyncpa [#allocation4], 1

</llo_original>
